<compile_context>
chip_gen: v5e
topology: v5e:2x2
jax: 0.10.0
libtpu: 0.0.40
codegen_flags: <defaults>
</compile_context>

<pallas_src>
import jax
import jax.numpy as jnp
from jax import lax
from jax.experimental import pallas as pl
from jax.experimental.pallas import tpu as pltpu

_LN_EPS = 1e-12  # nn.LayerNorm(embed_dim, eps=1e-12)


def _embeddings_kernel(ids_ref, tok_tbl_ref, pos_tbl_ref, gamma_ref, beta_ref, o_ref):
    # ids_ref:     (B*S, 1) int32  -- flattened token ids
    # tok_tbl_ref: (V, E)   f32    -- token embedding table
    # pos_tbl_ref: (S, E)   f32    -- position embedding rows 0..S-1
    # gamma/beta:  (1, E)   f32    -- LayerNorm affine parameters
    # o_ref:       (B*S, E) f32
    BS = ids_ref.shape[0]
    V, _ = tok_tbl_ref.shape
    S = pos_tbl_ref.shape[0]
    B = BS // S

    ids = ids_ref[...]                                            # (BS, 1) int32

    # --- Token embedding lookup as a one-hot matmul (single MXU push). ---
    vocab_iota = lax.broadcasted_iota(jnp.int32, (BS, V), 1)      # (BS, V)
    one_hot = (vocab_iota == ids).astype(tok_tbl_ref.dtype)       # (BS, V)
    tok = jnp.dot(one_hot, tok_tbl_ref[...],
                  preferred_element_type=jnp.float32)             # (BS, E) f32

    # --- Position embeddings: (S, E) slab repeated B times over sublanes. ---
    pos = jnp.tile(pos_tbl_ref[...].astype(jnp.float32), (B, 1))  # (BS, E)

    emb = tok + pos

    # --- LayerNorm over the embedding axis (biased variance, like PyTorch). ---
    mu = jnp.mean(emb, axis=-1, keepdims=True)
    xc = emb - mu
    var = jnp.mean(xc * xc, axis=-1, keepdims=True)
    inv = lax.rsqrt(var + _LN_EPS)                                # EUP rsqrt
    out = xc * inv * gamma_ref[...] + beta_ref[...]

    # TODO(synk): dropout is identity here (eval/inference forward); train-mode
    # dropout would use pltpu.prng_seed + pltpu.stateful_bernoulli.
    o_ref[...] = out.astype(o_ref.dtype)


def embeddings_forward(input_ids, tok_table, pos_table, gamma, beta):
    """input_ids: (B, S) int; tok_table: (V, E); pos_table: (window, E);
    gamma/beta: (E,).  Returns (B, S, E) float32."""
    B, S = input_ids.shape
    V, E = tok_table.shape

    ids_flat = input_ids.reshape(B * S, 1).astype(jnp.int32)
    pos_rows = pos_table[:S]                                      # static slice (S, E)

    out_flat = pl.pallas_call(
        _embeddings_kernel,
        out_shape=jax.ShapeDtypeStruct((B * S, E), jnp.float32),
        in_specs=[pl.BlockSpec(memory_space=pltpu.MemorySpace.VMEM)] * 5,
        out_specs=pl.BlockSpec(memory_space=pltpu.MemorySpace.VMEM),
    )(ids_flat, tok_table, pos_rows,
      gamma.reshape(1, E), beta.reshape(1, E))

    return out_flat.reshape(B, S, E)


def _reference(input_ids, tok_table, pos_table, gamma, beta):
    S = input_ids.shape[1]
    tok = tok_table[input_ids]                                    # (B, S, E)
    pos = pos_table[:S]                                           # (S, E)
    emb = tok + pos[None]
    mu = emb.mean(-1, keepdims=True)
    var = ((emb - mu) ** 2).mean(-1, keepdims=True)
    normed = (emb - mu) / jnp.sqrt(var + _LN_EPS)
    return normed * gamma + beta


if __name__ == "__main__":
    # Config: window_size = seq = 8, embed_dim = 32, vocab_size = 64, batch = 2.
    B, S, E, V, WINDOW = 2, 8, 32, 64, 8

    key = jax.random.PRNGKey(0)
    k_ids, k_tok, k_pos, k_g, k_b = jax.random.split(key, 5)

    input_ids = jax.random.randint(k_ids, (B, S), 0, V, dtype=jnp.int32)
    tok_table = jax.random.normal(k_tok, (V, E), jnp.float32)
    pos_table = jax.random.normal(k_pos, (WINDOW, E), jnp.float32)
    gamma = jax.random.uniform(k_g, (E,), jnp.float32, 0.5, 1.5)
    beta = jax.random.normal(k_b, (E,), jnp.float32) * 0.1

    out = embeddings_forward(input_ids, tok_table, pos_table, gamma, beta)
    out = jax.block_until_ready(out)

    ref = _reference(input_ids, tok_table, pos_table, gamma, beta)
    assert out.shape == (B, S, E)
    assert jnp.allclose(out, ref, atol=1e-5, rtol=1e-5), "mismatch vs reference"

    print("KERNEL_OK")
</pallas_src>

<mosaic_0001>
module attributes {stable_mosaic.version = 11 : i64} {
  func.func @_embeddings_kernel(%arg0: memref<16x1xi32, #tpu.memory_space<vmem>>, %arg1: memref<64x32xf32, #tpu.memory_space<vmem>>, %arg2: memref<8x32xf32, #tpu.memory_space<vmem>>, %arg3: memref<1x32xf32, #tpu.memory_space<vmem>>, %arg4: memref<1x32xf32, #tpu.memory_space<vmem>>, %arg5: memref<16x32xf32, #tpu.memory_space<vmem>>) attributes {dimension_semantics = [], scalar_prefetch = 0 : i64, scratch_operands = 0 : i64, tpu.core_type = #tpu.core_type<tc>} {
    %c0 = arith.constant 0 : index
    %c0_0 = arith.constant 0 : index
    %0 = vector.load %arg0[%c0, %c0_0] : memref<16x1xi32, #tpu.memory_space<vmem>>, vector<16x1xi32>
    %1 = tpu.iota {dimensions = array<i32: 1>} : vector<16x64xi32>
    %2 = vector.broadcast %0 : vector<16x1xi32> to vector<16x64xi32>
    %3 = arith.cmpi eq, %1, %2 : vector<16x64xi32>
    %4 = arith.extui %3 : vector<16x64xi1> to vector<16x64xi32>
    %5 = arith.sitofp %4 : vector<16x64xi32> to vector<16x64xf32>
    %c0_1 = arith.constant 0 : index
    %c0_2 = arith.constant 0 : index
    %6 = vector.load %arg1[%c0_1, %c0_2] : memref<64x32xf32, #tpu.memory_space<vmem>>, vector<64x32xf32>
    %cst = arith.constant dense<0.000000e+00> : vector<16x32xf32>
    %7 = tpu.matmul %5, %6, %cst {dimension_numbers = #tpu.dot_dimension_numbers<[1], [0], [0], [1], [0, 0, 1, 1], [], []>} : vector<16x64xf32>, vector<64x32xf32>, vector<16x32xf32> -> vector<16x32xf32>
    %c0_3 = arith.constant 0 : index
    %c0_4 = arith.constant 0 : index
    %8 = vector.load %arg2[%c0_3, %c0_4] : memref<8x32xf32, #tpu.memory_space<vmem>>, vector<8x32xf32>
    %9 = tpu.concatenate %8, %8 in 0 : vector<8x32xf32>, vector<8x32xf32> -> vector<16x32xf32>
    %10 = arith.addf %7, %9 : vector<16x32xf32>
    %cst_5 = arith.constant dense<0.000000e+00> : vector<16xf32>
    %11 = vector.multi_reduction <add>, %10, %cst_5 [1] : vector<16x32xf32> to vector<16xf32>
    %12 = vector.shape_cast %11 : vector<16xf32> to vector<16x1xf32>
    %cst_6 = arith.constant 3.200000e+01 : f32
    %13 = vector.broadcast %cst_6 : f32 to vector<16x1xf32>
    %14 = arith.divf %12, %13 : vector<16x1xf32>
    %15 = vector.broadcast %14 : vector<16x1xf32> to vector<16x32xf32>
    %16 = arith.subf %10, %15 : vector<16x32xf32>
    %17 = arith.mulf %16, %16 : vector<16x32xf32>
    %cst_7 = arith.constant dense<0.000000e+00> : vector<16xf32>
    %18 = vector.multi_reduction <add>, %17, %cst_7 [1] : vector<16x32xf32> to vector<16xf32>
    %19 = vector.shape_cast %18 : vector<16xf32> to vector<16x1xf32>
    %cst_8 = arith.constant 3.200000e+01 : f32
    %20 = vector.broadcast %cst_8 : f32 to vector<16x1xf32>
    %21 = arith.divf %19, %20 : vector<16x1xf32>
    %cst_9 = arith.constant 9.99999996E-13 : f32
    %22 = vector.broadcast %cst_9 : f32 to vector<16x1xf32>
    %23 = arith.addf %21, %22 : vector<16x1xf32>
    %24 = math.rsqrt %23 : vector<16x1xf32>
    %25 = vector.broadcast %24 : vector<16x1xf32> to vector<16x32xf32>
    %26 = arith.mulf %16, %25 : vector<16x32xf32>
    %c0_10 = arith.constant 0 : index
    %c0_11 = arith.constant 0 : index
    %27 = vector.load %arg3[%c0_10, %c0_11] : memref<1x32xf32, #tpu.memory_space<vmem>>, vector<1x32xf32>
    %28 = vector.broadcast %27 : vector<1x32xf32> to vector<16x32xf32>
    %29 = arith.mulf %26, %28 : vector<16x32xf32>
    %c0_12 = arith.constant 0 : index
    %c0_13 = arith.constant 0 : index
    %30 = vector.load %arg4[%c0_12, %c0_13] : memref<1x32xf32, #tpu.memory_space<vmem>>, vector<1x32xf32>
    %31 = vector.broadcast %30 : vector<1x32xf32> to vector<16x32xf32>
    %32 = arith.addf %29, %31 : vector<16x32xf32>
    %c0_14 = arith.constant 0 : index
    %c0_15 = arith.constant 0 : index
    %33 = vector.load %arg5[%c0_14, %c0_15] : memref<16x32xf32, #tpu.memory_space<vmem>>, vector<16x32xf32>
    tpu.vector_store %arg5[%c0_14, %c0_15], %32 {strides = array<i32>} : memref<16x32xf32, #tpu.memory_space<vmem>>, vector<16x32xf32>,
    return
  }
}

</mosaic_0001>

<llo_original>
// kernel: tpu_custom_call.1
$region0: #{tpu_custom_call.1}
  #allocation0 [shape = 'u32[]', space=smem, size = 0x4, offset = 0x4, fixed_abs, tag = 'smem constant byte address 0x4 - core index']
  #allocation1 [shape = 'u32[72,128]{1,0:T(1,128)}', space=vmem, size = 0x9000, scoped, tag = 'internal scratch']
  %s0 = inlined_call_operand.vmem [shape: s32[16,1], index: 0, kind: input, shape index: {}]
  %s1 = inlined_call_operand.vmem [shape: f32[64,32], index: 1, kind: input, shape index: {}]
  %s2 = inlined_call_operand.vmem [shape: f32[8,32], index: 2, kind: input, shape index: {}]
  %s3 = inlined_call_operand.vmem [shape: f32[1,32], index: 3, kind: input, shape index: {}]
  %s4 = inlined_call_operand.vmem [shape: f32[1,32], index: 4, kind: input, shape index: {}]
  %s5 = inlined_call_operand.hbm [shape: f32[16,32], index: 5, kind: output, shape index: {}]
  %s6 = sld [smem:[#allocation0]]
  $region30: #{tpu_custom_call.1} parent=0
    _
  %s8 = ssub.s32 1, %s6
  %s9 = scalar_select 0, %s8, %s6
  $region1: #{tpu_custom_call.1} parent=0
    #allocation2 [shape = 'u8[8192]{0}', space=vmem, size = 0x2000, scoped, tag = 'output window, operand 0, single buffered']
    #allocation3 [shape = 's32[1]{0}', space=sflag, size = 0x4, scoped, tag = 'scoped memory for tpu_custom_call.1']
    %10 = vsyncpa [#allocation3], 0
    // Predicated region
    $region2: #{tpu_custom_call.1} parent=1 // pred_check
      _
    $region3: #{tpu_custom_call.1} parent=1 // pred_check_branch
      %12 = sbr.rel (0) target = $region5
    $region4: #{tpu_custom_call.1} parent=1 // pred_region
      _
    $region5: #{tpu_custom_call.1} parent=1 // pred_fallthru
      _
    // Predicated region
    $region6: #{tpu_custom_call.1} parent=1 // pred_check
      _
    $region7: #{tpu_custom_call.1} parent=1 // pred_check_branch
      %14 = sbr.rel (0) target = $region9
    $region8: #{tpu_custom_call.1} parent=1 // pred_region
      _
    $region9: #{tpu_custom_call.1} parent=1 // pred_fallthru
      _
    // Predicated region
    $region10: #{tpu_custom_call.1} parent=1 // pred_check
      _
    $region11: #{tpu_custom_call.1} parent=1 // pred_check_branch
      %16 = sbr.rel (0) target = $region13
    $region12: #{tpu_custom_call.1} parent=1 // pred_region
      _
    $region13: #{tpu_custom_call.1} parent=1 // pred_fallthru
      _
    // Predicated region
    $region14: #{tpu_custom_call.1} parent=1 // pred_check
      _
    $region15: #{tpu_custom_call.1} parent=1 // pred_check_branch
      %18 = sbr.rel (0) target = $region17
    $region16: #{tpu_custom_call.1} parent=1 // pred_region
      _
    $region17: #{tpu_custom_call.1} parent=1 // pred_fallthru
      _
    // Predicated region
    $region18: #{tpu_custom_call.1} parent=1 // pred_check
      _
    $region19: #{tpu_custom_call.1} parent=1 // pred_check_branch
      %20 = sbr.rel (0) target = $region21
    $region20: #{tpu_custom_call.1} parent=1 // pred_region
      _
    $region21: #{tpu_custom_call.1} parent=1 // pred_fallthru
      _
    %v21 = vld [vmem:[%s0] sm:$0xff]
    %v22 = vld [vmem:[%s0 + $0x8] sm:$0xff]
    %v23 = vlaneseq
    %v24 = vand.u32 %v23, 127
    %25 = vset.pattern.permute.xlu0 0
    %26 = vperm.xlu0 %25, %v21
    %v27 = vpop.permute.xlu0 %26
    %28 = vset.pattern.permute.xlu0 0
    %29 = vperm.xlu0 %28, %v22
    %v30 = vpop.permute.xlu0 %29
    %vm31 = vcmp.eq.s32.totalorder %v24, %v27
    %vm32 = vcmp.eq.s32.totalorder %v24, %v30
    %v33 = vsel %vm31, 1, 0
    %v34 = vsel %vm32, 1, 0
    %v35 = vcvt.s32.f32 %v33
    %v36 = vcvt.s32.f32 %v34
    %v37 = vld [vmem:[%s1] sm:$0xff]
    %v38 = vld [vmem:[%s1 + $0x8] sm:$0xff]
    %v39 = vld [vmem:[%s1 + $0x10] sm:$0xff]
    %v40 = vld [vmem:[%s1 + $0x18] sm:$0xff]
    %v41 = vld [vmem:[%s1 + $0x20] sm:$0xff]
    %v42 = vld [vmem:[%s1 + $0x28] sm:$0xff]
    %v43 = vld [vmem:[%s1 + $0x30] sm:$0xff]
    %v44 = vld [vmem:[%s1 + $0x38] sm:$0xff]
    %v45 = vld [vmem:[%s2] sm:$0xff]
    %vm46 = vcmask 523264
    %v48 = vsel %vm46, %v35, 0
    %v51 = vsel %vm46, %v36, 0
    %53 = vmatpush.msra.mxu0 0.0
    %54 = vmatpush.msra.mxu0 0.0
    %55 = vmatpush.msra.mxu0 0.0
    %56 = vmatpush.msra.mxu0 0.0
    %57 = vmatpush.msra.mxu0 0.0
    %58 = vmatpush.msra.mxu0 0.0
    %59 = vmatpush.msra.mxu0 0.0
    %60 = vmatpush.msra.mxu0 0.0
    %61 = vmatpush.msra.mxu0 %v44
    %62 = vmatpush.msra.mxu0 %v43
    %63 = vmatpush.msra.mxu0 %v42
    %64 = vmatpush.msra.mxu0 %v41
    %65 = vmatpush.msra.mxu0 %v40
    %66 = vmatpush.msra.mxu0 %v39
    %67 = vmatpush.msra.mxu0 %v38
    %68 = vmatpush.msra.mxu0 %v37
    %69 = vmatmul.f32.gmra.mxu0 %v48
    %v70 = vpop.f32.mrf.mxu0
    %v71 = vadd.f32 %v45, %v70
    %72 = vmatmul.f32.gmra.mxu0 %v51
    %v73 = vpop.f32.mrf.mxu0
    %v74 = vadd.f32 %v45, %v73
    %75 = vdwg.mxu0
    %vm76 = vcmask 261120
    %v77 = vsel %vm76, %v71, 0.0
    %78 = vadd.xlane.f32.xlu0 %v77
    %v79 = vpop.xlane.xlu0 %78
    %v80 = vsel %vm76, %v74, 0.0
    %81 = vadd.xlane.f32.xlu0 %v80
    %v82 = vpop.xlane.xlu0 %81
    %v83 = vrcp.pop 32.0
    %v84 = vmul.f32 32.0, %v83
    %v85 = vsub.f32 1.0, %v84
    %v86 = vmul.f32 %v83, %v85
    %v87 = vadd.f32 %v83, %v86
    %vm88 = vweird.f32 %v83
    %v89 = vsel %vm88, %v83, %v87
    %v90 = vmul.f32 %v79, %v89
    %v91 = vmul.f32 %v82, %v89
    %v92 = vsub.f32 %v71, %v90
    %v93 = vsub.f32 %v74, %v91
    %v94 = vmul.f32 %v92, %v92
    %v95 = vmul.f32 %v93, %v93
    %v96 = vsel %vm76, %v94, 0.0
    %97 = vadd.xlane.f32.xlu0 %v96
    %v98 = vpop.xlane.xlu0 %97
    %v99 = vsel %vm76, %v95, 0.0
    %100 = vadd.xlane.f32.xlu0 %v99
    %v101 = vpop.xlane.xlu0 %100
    %v102 = vmul.f32 %v98, %v89
    %v103 = vmul.f32 %v101, %v89
    %v104 = vadd.f32 %v102, 1e-12
    %v105 = vadd.f32 %v103, 1e-12
    %v106 = vrsqrt.pop %v104
    %v107 = vmul.f32 %v106, %v104
    %v108 = vmul.f32 %v107, %v106
    %v109 = vmul.f32 0.5, %v108
    %v110 = vsub.f32 1.5, %v109
    %v111 = vmul.f32 %v106, %v110
    %vm112 = vweird.f32 %v104
    %vm113 = vweird.f32 %v106
    %vm114 = vmor %vm112, %vm113
    %v115 = vsel %vm114, %v106, %v111
    %v116 = vrsqrt.pop %v105
    %v117 = vmul.f32 %v116, %v105
    %v118 = vmul.f32 %v117, %v116
    %v119 = vmul.f32 0.5, %v118
    %v120 = vsub.f32 1.5, %v119
    %v121 = vmul.f32 %v116, %v120
    %vm122 = vweird.f32 %v105
    %vm123 = vweird.f32 %v116
    %vm124 = vmor %vm122, %vm123
    %v125 = vsel %vm124, %v116, %v121
    %v126 = vmul.f32 %v92, %v115
    %v127 = vmul.f32 %v93, %v125
    %v128 = vld [vmem:[%s3] sm:$0x1]
    %v130 = vperm.slane %v128, 0
    %v132 = vmul.f32 %v126, %v130
    %v133 = vmul.f32 %v127, %v130
    %v134 = vld [vmem:[%s4] sm:$0x1]
    %v136 = vperm.slane %v134, 0
    %v138 = vadd.f32 %v132, %v136
    %v139 = vadd.f32 %v133, %v136
    %140 = vst.msk [vmem:[#allocation2] sm:$0xff] %vm76, %v138
    %141 = vst.msk [vmem:[#allocation2 + $0x8] sm:$0xff] %vm76, %v139
    // Predicated region
    $region22: #{tpu_custom_call.1} parent=1 // pred_check
      _
    $region23: #{tpu_custom_call.1} parent=1 // pred_check_branch
      %143 = sbr.rel (0) target = $region25
    $region24: #{tpu_custom_call.1} parent=1 // pred_region
      %145 = vsyncadd [#allocation3], 0
      %s146 = sshll.u32 [#allocation2], 4
      %s147 = int_to_ptr.vmem [resolvable:$true] %s146
      %s148 = sshll.u32 %s5, 4
      %s149 = int_to_ptr.hbm [resolvable:$true] %s148
      %154 = dma.vmem_to_hbm [thread:$0]  %s147, 256, %s149, [#allocation3], 128, 128, 8
    $region25: #{tpu_custom_call.1} parent=1 // pred_fallthru
      _
    // Predicated region
    $region26: #{tpu_custom_call.1} parent=1 // pred_check
      _
    $region27: #{tpu_custom_call.1} parent=1 // pred_check_branch
      %156 = sbr.rel (0) target = $region29
    $region28: #{tpu_custom_call.1} parent=1 // pred_region
      %158 = dma.done [#allocation3], 256
    $region29: #{tpu_custom_call.1} parent=1 // pred_fallthru
      _
    %159 = vsyncpa [#allocation3], 1

</llo_original>
